<compile_context>
chip_gen: v7x
topology: tpu7x:2x2x1
jax: 0.10.0
libtpu: 0.0.40
codegen_flags: <defaults>
</compile_context>

<pallas_src>
import functools

import jax
import jax.numpy as jnp
from jax.experimental import pallas as pl
from jax.experimental.pallas import tpu as pltpu

MAX_LINEAR = 0.25
MAX_ANGULAR = 0.5
HEAD_PAD = 128           # fused head padded to a full lane width


def _round_up(x, m):
    return ((x + m - 1) // m) * m


def actor_kernel(x_ref, w1_ref, b1_ref, w2_ref, b2_ref, wh_ref, bh_ref, o_ref):
    x = x_ref[...]                                   # (tb, D), f32 or bf16

    # fc1 + relu (f32 accumulate, f32 element-wise)
    h1 = jnp.dot(x, w1_ref[...], preferred_element_type=jnp.float32) + b1_ref[...]
    h1 = jnp.maximum(h1, 0.0)

    # fc2 + relu
    h2 = jnp.dot(h1.astype(w2_ref.dtype), w2_ref[...],
                 preferred_element_type=jnp.float32) + b2_ref[...]
    h2 = jnp.maximum(h2, 0.0)

    # fused, lane-padded heads: col 0 = mu_linear, col 1 = mu_angular,
    # cols 2..127 are zero weights (discarded by the wrapper slice).
    z = jnp.dot(h2.astype(wh_ref.dtype), wh_ref[...],
                preferred_element_type=jnp.float32) + bh_ref[...]

    col = jax.lax.broadcasted_iota(jnp.int32, z.shape, 1)
    out = jnp.where(col == 0,
                    jax.nn.sigmoid(z) * MAX_LINEAR,
                    jnp.tanh(z) * MAX_ANGULAR)
    o_ref[...] = out.astype(o_ref.dtype)             # lane-dense (tb, 128) store


def prepare_params(params, use_bf16=False):
    """One-time parameter prep (hoisted out of the per-call hot path):
    fuse the two 1-wide heads into a single lane-padded (fc2, 128) weight and
    (1, 128) bias, optionally cast MXU operands to bf16 (biases stay f32)."""
    w1, b1, w2, b2, w_lin, b_lin, w_ang, b_ang = params
    fc2 = w_lin.shape[0]

    wh = jnp.zeros((fc2, HEAD_PAD), jnp.float32)
    wh = wh.at[:, 0:1].set(w_lin).at[:, 1:2].set(w_ang)
    bh = jnp.zeros((1, HEAD_PAD), jnp.float32)
    bh = bh.at[:, 0:1].set(b_lin).at[:, 1:2].set(b_ang)

    mxu_dt = jnp.bfloat16 if use_bf16 else jnp.float32
    return (w1.astype(mxu_dt), b1, w2.astype(mxu_dt), b2, wh.astype(mxu_dt), bh)


@functools.partial(jax.jit, static_argnames=("tile_b",))
def actor_forward(state, prepared, tile_b=512):
    """state: (B, input_dims) float32. prepared: output of prepare_params().
    Returns (B, 2) float32: [:, 0] = linear action, [:, 1] = angular action."""
    w1, b1, w2, b2, wh, bh = prepared
    B, D = state.shape
    fc1 = w1.shape[1]
    fc2 = w2.shape[1]

    # MXU operand dtype follows the prepared weights (f32 or bf16).
    x = state.astype(w1.dtype)

    # Batch tile: multiple of 8 sublanes, capped at tile_b; pad batch to fit.
    tb = _round_up(min(tile_b, _round_up(B, 8)), 8)
    Bp = _round_up(B, tb)
    if Bp != B:
        x = jnp.pad(x, ((0, Bp - B), (0, 0)))
    nb = pl.cdiv(Bp, tb)

    itemsize = lambda a: jnp.dtype(a.dtype).itemsize
    cost = pl.CostEstimate(
        flops=2 * Bp * (D * fc1 + fc1 * fc2 + fc2 * HEAD_PAD),
        transcendentals=2 * Bp * HEAD_PAD,
        bytes_accessed=(Bp * D * itemsize(x)
                        + sum(p.size * itemsize(p) for p in prepared)
                        + Bp * HEAD_PAD * 4),
    )

    const = lambda i: (0, 0)  # weights/biases: same block every step -> VMEM-resident
    out = pl.pallas_call(
        actor_kernel,
        out_shape=jax.ShapeDtypeStruct((Bp, HEAD_PAD), jnp.float32),
        grid=(nb,),
        in_specs=[
            pl.BlockSpec((tb, D), lambda i: (i, 0)),
            pl.BlockSpec(w1.shape, const),
            pl.BlockSpec(b1.shape, const),
            pl.BlockSpec(w2.shape, const),
            pl.BlockSpec(b2.shape, const),
            pl.BlockSpec(wh.shape, const),
            pl.BlockSpec(bh.shape, const),
        ],
        out_specs=pl.BlockSpec((tb, HEAD_PAD), lambda i: (i, 0)),
        compiler_params=pltpu.CompilerParams(dimension_semantics=("parallel",)),
        cost_estimate=cost,
    )(x, w1, b1, w2, b2, wh, bh)

    return out[:B, :2]


def init_params(key, input_dims, fc1_dims, fc2_dims):
    """Deterministic synthetic init (PyTorch-like uniform ranges).
    Weights stored pre-transposed as (in_features, out_features)."""
    ks = jax.random.split(key, 8)

    def lin(kw, kb, fan_in, fan_out):
        bound = 1.0 / jnp.sqrt(fan_in)
        w = jax.random.uniform(kw, (fan_in, fan_out), jnp.float32, -bound, bound)
        b = jax.random.uniform(kb, (1, fan_out), jnp.float32, -bound, bound)
        return w, b

    w1, b1 = lin(ks[0], ks[1], input_dims, fc1_dims)
    w2, b2 = lin(ks[2], ks[3], fc1_dims, fc2_dims)
    w_lin, b_lin = lin(ks[4], ks[5], fc2_dims, 1)
    w_ang, b_ang = lin(ks[6], ks[7], fc2_dims, 1)
    return (w1, b1, w2, b2, w_lin, b_lin, w_ang, b_ang)


def reference_forward(state, params):
    w1, b1, w2, b2, w_lin, b_lin, w_ang, b_ang = params
    h1 = jax.nn.relu(state @ w1 + b1)
    h2 = jax.nn.relu(h1 @ w2 + b2)
    linear = jax.nn.sigmoid(h2 @ w_lin + b_lin) * MAX_LINEAR
    angular = jnp.tanh(h2 @ w_ang + b_ang) * MAX_ANGULAR
    return jnp.concatenate([linear, angular], axis=1)


if __name__ == "__main__":
    key = jax.random.PRNGKey(0)
    k_param, k_state, k_big = jax.random.split(key, 3)

    batch = 4
    input_dims = 16     # ActorNetwork(input_dims=[16], ...)
    fc1_dims = 64
    fc2_dims = 32

    params = init_params(k_param, input_dims, fc1_dims, fc2_dims)
    state = jax.random.normal(k_state, (batch, input_dims), jnp.float32)

    # --- f32 path (default), small batch: exact-ish match to reference ---
    prep_f32 = prepare_params(params, use_bf16=False)
    out = jax.block_until_ready(actor_forward(state, prep_f32))
    ref = reference_forward(state, params)
    assert out.shape == (batch, 2)
    assert jnp.allclose(out, ref, atol=1e-5, rtol=1e-5)

    # --- f32 path, large padded batch: exercises the batch grid (>1 step) ---
    big_b = 1000
    state_big = jax.random.normal(k_big, (big_b, input_dims), jnp.float32)
    out_big = jax.block_until_ready(actor_forward(state_big, prep_f32, tile_b=256))
    ref_big = reference_forward(state_big, params)
    assert out_big.shape == (big_b, 2)
    assert jnp.allclose(out_big, ref_big, atol=1e-5, rtol=1e-5)

    # --- bf16 MXU-operand path (v6e/v7x recommendation); loose tolerance ---
    prep_bf16 = prepare_params(params, use_bf16=True)
    out_bf16 = jax.block_until_ready(actor_forward(state_big, prep_bf16, tile_b=256))
    assert out_bf16.shape == (big_b, 2)
    assert jnp.allclose(out_bf16, ref_big, atol=3e-2, rtol=5e-2)

    print("KERNEL_OK")
</pallas_src>

<mosaic_0001>
module attributes {stable_mosaic.version = 11 : i64} {
  func.func @actor_kernel(%arg0: i32, %arg1: memref<8x16xf32, #tpu.memory_space<vmem>>, %arg2: memref<16x64xf32, #tpu.memory_space<vmem>>, %arg3: memref<1x64xf32, #tpu.memory_space<vmem>>, %arg4: memref<64x32xf32, #tpu.memory_space<vmem>>, %arg5: memref<1x32xf32, #tpu.memory_space<vmem>>, %arg6: memref<32x128xf32, #tpu.memory_space<vmem>>, %arg7: memref<1x128xf32, #tpu.memory_space<vmem>>, %arg8: memref<8x128xf32, #tpu.memory_space<vmem>>) attributes {dimension_semantics = [#tpu.dimension_semantics<parallel>], iteration_bounds = array<i64: 1>, scalar_prefetch = 0 : i64, scratch_operands = 0 : i64, tpu.core_type = #tpu.core_type<tc>, window_params = [{transform_indices = @transform_0, window_bounds = array<i64: 8, 16>}, {pipeline_mode = #tpu.pipeline_mode<synchronous>, transform_indices = @transform_1, window_bounds = array<i64: 16, 64>}, {pipeline_mode = #tpu.pipeline_mode<synchronous>, transform_indices = @transform_2, window_bounds = array<i64: 1, 64>}, {pipeline_mode = #tpu.pipeline_mode<synchronous>, transform_indices = @transform_3, window_bounds = array<i64: 64, 32>}, {pipeline_mode = #tpu.pipeline_mode<synchronous>, transform_indices = @transform_4, window_bounds = array<i64: 1, 32>}, {pipeline_mode = #tpu.pipeline_mode<synchronous>, transform_indices = @transform_5, window_bounds = array<i64: 32, 128>}, {pipeline_mode = #tpu.pipeline_mode<synchronous>, transform_indices = @transform_6, window_bounds = array<i64: 1, 128>}, {transform_indices = @transform_7, window_bounds = array<i64: 8, 128>}]} {
    %c0 = arith.constant 0 : index
    %c0_0 = arith.constant 0 : index
    %0 = vector.load %arg1[%c0, %c0_0] : memref<8x16xf32, #tpu.memory_space<vmem>>, vector<8x16xf32>
    %c0_1 = arith.constant 0 : index
    %c0_2 = arith.constant 0 : index
    %1 = vector.load %arg2[%c0_1, %c0_2] : memref<16x64xf32, #tpu.memory_space<vmem>>, vector<16x64xf32>
    %cst = arith.constant dense<0.000000e+00> : vector<8x64xf32>
    %2 = tpu.matmul %0, %1, %cst {dimension_numbers = #tpu.dot_dimension_numbers<[1], [0], [0], [1], [0, 0, 1, 1], [], []>} : vector<8x16xf32>, vector<16x64xf32>, vector<8x64xf32> -> vector<8x64xf32>
    %c0_3 = arith.constant 0 : index
    %c0_4 = arith.constant 0 : index
    %3 = vector.load %arg3[%c0_3, %c0_4] : memref<1x64xf32, #tpu.memory_space<vmem>>, vector<1x64xf32>
    %4 = vector.broadcast %3 : vector<1x64xf32> to vector<8x64xf32>
    %5 = arith.addf %2, %4 : vector<8x64xf32>
    %cst_5 = arith.constant 0.000000e+00 : f32
    %6 = vector.broadcast %cst_5 : f32 to vector<8x64xf32>
    %7 = arith.maximumf %5, %6 : vector<8x64xf32>
    %c0_6 = arith.constant 0 : index
    %c0_7 = arith.constant 0 : index
    %8 = vector.load %arg4[%c0_6, %c0_7] : memref<64x32xf32, #tpu.memory_space<vmem>>, vector<64x32xf32>
    %cst_8 = arith.constant dense<0.000000e+00> : vector<8x32xf32>
    %9 = tpu.matmul %7, %8, %cst_8 {dimension_numbers = #tpu.dot_dimension_numbers<[1], [0], [0], [1], [0, 0, 1, 1], [], []>} : vector<8x64xf32>, vector<64x32xf32>, vector<8x32xf32> -> vector<8x32xf32>
    %c0_9 = arith.constant 0 : index
    %c0_10 = arith.constant 0 : index
    %10 = vector.load %arg5[%c0_9, %c0_10] : memref<1x32xf32, #tpu.memory_space<vmem>>, vector<1x32xf32>
    %11 = vector.broadcast %10 : vector<1x32xf32> to vector<8x32xf32>
    %12 = arith.addf %9, %11 : vector<8x32xf32>
    %cst_11 = arith.constant 0.000000e+00 : f32
    %13 = vector.broadcast %cst_11 : f32 to vector<8x32xf32>
    %14 = arith.maximumf %12, %13 : vector<8x32xf32>
    %c0_12 = arith.constant 0 : index
    %c0_13 = arith.constant 0 : index
    %15 = vector.load %arg6[%c0_12, %c0_13] : memref<32x128xf32, #tpu.memory_space<vmem>>, vector<32x128xf32>
    %cst_14 = arith.constant dense<0.000000e+00> : vector<8x128xf32>
    %16 = tpu.matmul %14, %15, %cst_14 {dimension_numbers = #tpu.dot_dimension_numbers<[1], [0], [0], [1], [0, 0, 1, 1], [], []>} : vector<8x32xf32>, vector<32x128xf32>, vector<8x128xf32> -> vector<8x128xf32>
    %c0_15 = arith.constant 0 : index
    %c0_16 = arith.constant 0 : index
    %17 = vector.load %arg7[%c0_15, %c0_16] : memref<1x128xf32, #tpu.memory_space<vmem>>, vector<1x128xf32>
    %18 = vector.broadcast %17 : vector<1x128xf32> to vector<8x128xf32>
    %19 = arith.addf %16, %18 : vector<8x128xf32>
    %20 = tpu.iota {dimensions = array<i32: 1>} : vector<8x128xi32>
    %c0_i32 = arith.constant 0 : i32
    %21 = vector.broadcast %c0_i32 : i32 to vector<8x128xi32>
    %22 = arith.cmpi eq, %20, %21 : vector<8x128xi32>
    %23 = arith.negf %19 : vector<8x128xf32>
    %24 = math.exp %23 : vector<8x128xf32>
    %cst_17 = arith.constant 1.000000e+00 : f32
    %25 = vector.broadcast %cst_17 : f32 to vector<8x128xf32>
    %26 = arith.addf %25, %24 : vector<8x128xf32>
    %27 = arith.divf %25, %26 : vector<8x128xf32>
    %cst_18 = arith.constant 2.500000e-01 : f32
    %28 = vector.broadcast %cst_18 : f32 to vector<8x128xf32>
    %29 = arith.mulf %27, %28 : vector<8x128xf32>
    %30 = math.tanh %19 : vector<8x128xf32>
    %cst_19 = arith.constant 5.000000e-01 : f32
    %31 = vector.broadcast %cst_19 : f32 to vector<8x128xf32>
    %32 = arith.mulf %30, %31 : vector<8x128xf32>
    %33 = arith.select %22, %29, %32 : vector<8x128xi1>, vector<8x128xf32>
    %c0_20 = arith.constant 0 : index
    %c0_21 = arith.constant 0 : index
    %34 = vector.load %arg8[%c0_20, %c0_21] : memref<8x128xf32, #tpu.memory_space<vmem>>, vector<8x128xf32>
    tpu.vector_store %arg8[%c0_20, %c0_21], %33 {strides = array<i32>} : memref<8x128xf32, #tpu.memory_space<vmem>>, vector<8x128xf32>,
    return
  }
  func.func @transform_0(%arg0: i32) -> (i32, i32) {
    %c0_i32 = arith.constant 0 : i32
    %c0_i32_0 = arith.constant 0 : i32
    return %arg0, %c0_i32 : i32, i32
  }
  func.func @transform_1(%arg0: i32) -> (i32, i32) {
    %c0_i32 = arith.constant 0 : i32
    %c0_i32_0 = arith.constant 0 : i32
    %c0_i32_1 = arith.constant 0 : i32
    return %c0_i32, %c0_i32_0 : i32, i32
  }
  func.func @transform_2(%arg0: i32) -> (i32, i32) {
    %c0_i32 = arith.constant 0 : i32
    %c0_i32_0 = arith.constant 0 : i32
    %c0_i32_1 = arith.constant 0 : i32
    return %c0_i32, %c0_i32_0 : i32, i32
  }
  func.func @transform_3(%arg0: i32) -> (i32, i32) {
    %c0_i32 = arith.constant 0 : i32
    %c0_i32_0 = arith.constant 0 : i32
    %c0_i32_1 = arith.constant 0 : i32
    return %c0_i32, %c0_i32_0 : i32, i32
  }
  func.func @transform_4(%arg0: i32) -> (i32, i32) {
    %c0_i32 = arith.constant 0 : i32
    %c0_i32_0 = arith.constant 0 : i32
    %c0_i32_1 = arith.constant 0 : i32
    return %c0_i32, %c0_i32_0 : i32, i32
  }
  func.func @transform_5(%arg0: i32) -> (i32, i32) {
    %c0_i32 = arith.constant 0 : i32
    %c0_i32_0 = arith.constant 0 : i32
    %c0_i32_1 = arith.constant 0 : i32
    return %c0_i32, %c0_i32_0 : i32, i32
  }
  func.func @transform_6(%arg0: i32) -> (i32, i32) {
    %c0_i32 = arith.constant 0 : i32
    %c0_i32_0 = arith.constant 0 : i32
    %c0_i32_1 = arith.constant 0 : i32
    return %c0_i32, %c0_i32_0 : i32, i32
  }
  func.func @transform_7(%arg0: i32) -> (i32, i32) {
    %c0_i32 = arith.constant 0 : i32
    %c0_i32_0 = arith.constant 0 : i32
    return %arg0, %c0_i32 : i32, i32
  }
}

</mosaic_0001>

<llo_original>
// kernel: actor_forward.1
$region0: #{actor_forward.1}
  #allocation0 [shape = 'u32[]', space=smem, size = 0x4, offset = 0x4, fixed_abs, tag = 'smem constant byte address 0x4 - core index']
  #allocation1 [shape = 'u32[144,128]{1,0:T(1,128)}', space=vmem, size = 0x12000, scoped, tag = 'internal scratch']
  %s0 = inlined_call_operand.vmem [shape: f32[8,16], index: 0, kind: input, shape index: {}]
  %s1 = inlined_call_operand.vmem [shape: f32[16,64], index: 1, kind: input, shape index: {}]
  %s2 = inlined_call_operand.vmem [shape: f32[1,64], index: 2, kind: input, shape index: {}]
  %s3 = inlined_call_operand.vmem [shape: f32[64,32], index: 3, kind: input, shape index: {}]
  %s4 = inlined_call_operand.vmem [shape: f32[1,32], index: 4, kind: input, shape index: {}]
  %s5 = inlined_call_operand.vmem [shape: f32[32,128], index: 5, kind: input, shape index: {}]
  %s6 = inlined_call_operand.vmem [shape: f32[1,128], index: 6, kind: input, shape index: {}]
  %s7 = inlined_call_operand.vmem [shape: f32[8,128], index: 7, kind: output, shape index: {}]
  %s8 = sld [smem:[#allocation0]]
  $region38: #{actor_forward.1} parent=0
    _
  %s10 = ssub.s32 1, %s8
  %s11 = scalar_select 0, %s10, %s8
  // Predicated region
  $region2: #{actor_forward.1} parent=0 // pred_check
    _
  $region3: #{actor_forward.1} parent=0 // pred_check_branch
    %13 = sbr.rel (0) target = $region5
  $region4: #{actor_forward.1} parent=0 // pred_region
    _
  $region5: #{actor_forward.1} parent=0 // pred_fallthru
    _
  // Predicated region
  $region6: #{actor_forward.1} parent=0 // pred_check
    _
  $region7: #{actor_forward.1} parent=0 // pred_check_branch
    %15 = sbr.rel (0) target = $region9
  $region8: #{actor_forward.1} parent=0 // pred_region
    _
  $region9: #{actor_forward.1} parent=0 // pred_fallthru
    _
  // Predicated region
  $region10: #{actor_forward.1} parent=0 // pred_check
    _
  $region11: #{actor_forward.1} parent=0 // pred_check_branch
    %17 = sbr.rel (0) target = $region13
  $region12: #{actor_forward.1} parent=0 // pred_region
    _
  $region13: #{actor_forward.1} parent=0 // pred_fallthru
    _
  // Predicated region
  $region14: #{actor_forward.1} parent=0 // pred_check
    _
  $region15: #{actor_forward.1} parent=0 // pred_check_branch
    %19 = sbr.rel (0) target = $region17
  $region16: #{actor_forward.1} parent=0 // pred_region
    _
  $region17: #{actor_forward.1} parent=0 // pred_fallthru
    _
  // Predicated region
  $region18: #{actor_forward.1} parent=0 // pred_check
    _
  $region19: #{actor_forward.1} parent=0 // pred_check_branch
    %21 = sbr.rel (0) target = $region21
  $region20: #{actor_forward.1} parent=0 // pred_region
    _
  $region21: #{actor_forward.1} parent=0 // pred_fallthru
    _
  // Predicated region
  $region22: #{actor_forward.1} parent=0 // pred_check
    _
  $region23: #{actor_forward.1} parent=0 // pred_check_branch
    %23 = sbr.rel (0) target = $region25
  $region24: #{actor_forward.1} parent=0 // pred_region
    _
  $region25: #{actor_forward.1} parent=0 // pred_fallthru
    _
  // Predicated region
  $region26: #{actor_forward.1} parent=0 // pred_check
    _
  $region27: #{actor_forward.1} parent=0 // pred_check_branch
    %25 = sbr.rel (0) target = $region29
  $region28: #{actor_forward.1} parent=0 // pred_region
    _
  $region29: #{actor_forward.1} parent=0 // pred_fallthru
    _
  %v26 = vld [vmem:[%s0] sm:$0xff]
  %v27 = vld [vmem:[%s1] sm:$0xff]
  %v28 = vld [vmem:[%s1 + $0x8] sm:$0xff]
  %v29 = vld [vmem:[%s2] sm:$0x1]
  %v31 = vlaneseq
  %v32 = vshrl.u32 %v31, 7
  %v33 = vsub.s32 0, %v32
  %v34 = vrot.slane %v29, %v33
  %vm36 = vcmask 130048
  %v38 = vsel %vm36, %v26, 0
  %40 = vmatprep.subr.mxu0 0.0
  %41 = vmatpush1.msra.mxu0 %v27
  %42 = vmatprep.subr.mxu0 0.0
  %43 = vmatpush1.msra.mxu0 %v28
  %44 = vmatprep.subr.mxu0 0.0
  %45 = vmatpush1.msra.mxu0 0.0
  %46 = vmatprep.subr.mxu0 0.0
  %47 = vmatpush1.msra.mxu0 0.0
  %48 = vmatprep.subr.mxu0 0.0
  %49 = vmatpush1.msra.mxu0 0.0
  %50 = vmatprep.subr.mxu0 0.0
  %51 = vmatpush1.msra.mxu0 0.0
  %52 = vmatprep.subr.mxu0 0.0
  %53 = vmatpush1.msra.mxu0 0.0
  %54 = vmatprep.subr.mxu0 0.0
  %55 = vmatpush1.msra.mxu0 0.0
  %56 = vmatprep.subr.mxu0 0.0
  %57 = vmatpush1.msra.mxu0 0.0
  %58 = vmatprep.subr.mxu0 0.0
  %59 = vmatpush1.msra.mxu0 0.0
  %60 = vmatprep.subr.mxu0 0.0
  %61 = vmatpush1.msra.mxu0 0.0
  %62 = vmatprep.subr.mxu0 0.0
  %63 = vmatpush1.msra.mxu0 0.0
  %64 = vmatprep.subr.mxu0 0.0
  %65 = vmatpush1.msra.mxu0 0.0
  %66 = vmatprep.subr.mxu0 0.0
  %67 = vmatpush1.msra.mxu0 0.0
  %68 = vmatprep.subr.mxu0 0.0
  %69 = vmatpush1.msra.mxu0 0.0
  %70 = vmatprep.subr.mxu0 0.0
  %71 = vmatpush1.msra.mxu0 0.0
  %72 = vmatprep.subr.mxu0 0.0
  %73 = vmatpush1.msra.mxu0 0.0
  %74 = vmatprep.subr.mxu0 0.0
  %75 = vmatpush1.msra.mxu0 0.0
  %76 = vmatprep.subr.mxu0 0.0
  %77 = vmatpush1.msra.mxu0 0.0
  %78 = vmatprep.subr.mxu0 0.0
  %79 = vmatpush1.msra.mxu0 0.0
  %80 = vmatprep.subr.mxu0 0.0
  %81 = vmatpush1.msra.mxu0 0.0
  %82 = vmatprep.subr.mxu0 0.0
  %83 = vmatpush1.msra.mxu0 0.0
  %84 = vmatprep.subr.mxu0 0.0
  %85 = vmatpush1.msra.mxu0 0.0
  %86 = vmatprep.subr.mxu0 0.0
  %87 = vmatpush1.msra.mxu0 0.0
  %88 = vmatprep.subr.mxu0 0.0
  %89 = vmatpush1.msra.mxu0 0.0
  %90 = vmatprep.subr.mxu0 0.0
  %91 = vmatpush1.msra.mxu0 0.0
  %92 = vmatprep.subr.mxu0 0.0
  %93 = vmatpush1.msra.mxu0 0.0
  %94 = vmatprep.subr.mxu0 0.0
  %95 = vmatpush1.msra.mxu0 0.0
  %96 = vmatprep.subr.mxu0 0.0
  %97 = vmatpush1.msra.mxu0 0.0
  %98 = vmatprep.subr.mxu0 0.0
  %99 = vmatpush1.msra.mxu0 0.0
  %100 = vmatprep.subr.mxu0 0.0
  %101 = vmatpush1.msra.mxu0 0.0
  %102 = vmatprep.subr.mxu0 0.0
  %103 = vmatpush1.msra.mxu0 0.0
  %104 = vmatprep.mubr.f32.mxu0 0.0
  %105 = vmatmul.mubr.f32.gmra.mrb[0].mxu0 %v38
  %v106 = vpop.f32.mrb[0].mxu0
  %v107 = vadd.f32 %v34, %v106
  %v108 = vpop.f32.mrb[0].mxu0
  %109 = vdwg.mxu0
  %v110 = vmax.f32 %v107, 0.0
  %v111 = vld [vmem:[%s3] sm:$0xff]
  %v112 = vld [vmem:[%s3 + $0x8] sm:$0xff]
  %v113 = vld [vmem:[%s3 + $0x10] sm:$0xff]
  %v114 = vld [vmem:[%s3 + $0x18] sm:$0xff]
  %v115 = vld [vmem:[%s3 + $0x20] sm:$0xff]
  %v116 = vld [vmem:[%s3 + $0x28] sm:$0xff]
  %v117 = vld [vmem:[%s3 + $0x30] sm:$0xff]
  %v118 = vld [vmem:[%s3 + $0x38] sm:$0xff]
  %v119 = vld [vmem:[%s4] sm:$0x1]
  %v121 = vlaneseq
  %v122 = vshrl.u32 %v121, 7
  %v123 = vsub.s32 0, %v122
  %v124 = vrot.slane %v119, %v123
  %vm126 = vcmask 523264
  %v128 = vsel %vm126, %v110, 0
  %130 = vmatprep.subr.mxu0 0.0
  %131 = vmatpush1.msra.mxu0 %v111
  %132 = vmatprep.subr.mxu0 0.0
  %133 = vmatpush1.msra.mxu0 %v112
  %134 = vmatprep.subr.mxu0 0.0
  %135 = vmatpush1.msra.mxu0 %v113
  %136 = vmatprep.subr.mxu0 0.0
  %137 = vmatpush1.msra.mxu0 %v114
  %138 = vmatprep.subr.mxu0 0.0
  %139 = vmatpush1.msra.mxu0 %v115
  %140 = vmatprep.subr.mxu0 0.0
  %141 = vmatpush1.msra.mxu0 %v116
  %142 = vmatprep.subr.mxu0 0.0
  %143 = vmatpush1.msra.mxu0 %v117
  %144 = vmatprep.subr.mxu0 0.0
  %145 = vmatpush1.msra.mxu0 %v118
  %146 = vmatprep.subr.mxu0 0.0
  %147 = vmatpush1.msra.mxu0 0.0
  %148 = vmatprep.subr.mxu0 0.0
  %149 = vmatpush1.msra.mxu0 0.0
  %150 = vmatprep.subr.mxu0 0.0
  %151 = vmatpush1.msra.mxu0 0.0
  %152 = vmatprep.subr.mxu0 0.0
  %153 = vmatpush1.msra.mxu0 0.0
  %154 = vmatprep.subr.mxu0 0.0
  %155 = vmatpush1.msra.mxu0 0.0
  %156 = vmatprep.subr.mxu0 0.0
  %157 = vmatpush1.msra.mxu0 0.0
  %158 = vmatprep.subr.mxu0 0.0
  %159 = vmatpush1.msra.mxu0 0.0
  %160 = vmatprep.subr.mxu0 0.0
  %161 = vmatpush1.msra.mxu0 0.0
  %162 = vmatprep.subr.mxu0 0.0
  %163 = vmatpush1.msra.mxu0 0.0
  %164 = vmatprep.subr.mxu0 0.0
  %165 = vmatpush1.msra.mxu0 0.0
  %166 = vmatprep.subr.mxu0 0.0
  %167 = vmatpush1.msra.mxu0 0.0
  %168 = vmatprep.subr.mxu0 0.0
  %169 = vmatpush1.msra.mxu0 0.0
  %170 = vmatprep.subr.mxu0 0.0
  %171 = vmatpush1.msra.mxu0 0.0
  %172 = vmatprep.subr.mxu0 0.0
  %173 = vmatpush1.msra.mxu0 0.0
  %174 = vmatprep.subr.mxu0 0.0
  %175 = vmatpush1.msra.mxu0 0.0
  %176 = vmatprep.subr.mxu0 0.0
  %177 = vmatpush1.msra.mxu0 0.0
  %178 = vmatprep.subr.mxu0 0.0
  %179 = vmatpush1.msra.mxu0 0.0
  %180 = vmatprep.subr.mxu0 0.0
  %181 = vmatpush1.msra.mxu0 0.0
  %182 = vmatprep.subr.mxu0 0.0
  %183 = vmatpush1.msra.mxu0 0.0
  %184 = vmatprep.subr.mxu0 0.0
  %185 = vmatpush1.msra.mxu0 0.0
  %186 = vmatprep.subr.mxu0 0.0
  %187 = vmatpush1.msra.mxu0 0.0
  %188 = vmatprep.subr.mxu0 0.0
  %189 = vmatpush1.msra.mxu0 0.0
  %190 = vmatprep.subr.mxu0 0.0
  %191 = vmatpush1.msra.mxu0 0.0
  %192 = vmatprep.subr.mxu0 0.0
  %193 = vmatpush1.msra.mxu0 0.0
  %194 = vmatprep.mubr.f32.mxu0 0.0
  %195 = vmatmul.mubr.f32.gmra.mrb[0].mxu0 %v128
  %v196 = vpop.f32.mrb[0].mxu0
  %v197 = vadd.f32 %v124, %v196
  %v198 = vpop.f32.mrb[0].mxu0
  %199 = vdwg.mxu0
  %v200 = vmax.f32 %v197, 0.0
  %v201 = vld [vmem:[%s5] sm:$0xff]
  %v202 = vld [vmem:[%s5 + $0x8] sm:$0xff]
  %v203 = vld [vmem:[%s5 + $0x10] sm:$0xff]
  %v204 = vld [vmem:[%s5 + $0x18] sm:$0xff]
  %v205 = vld [vmem:[%s6] sm:$0x1]
  %v207 = vlaneseq
  %v208 = vshrl.u32 %v207, 7
  %v209 = vsub.s32 0, %v208
  %v210 = vrot.slane %v205, %v209
  %vm212 = vcmask 261120
  %v214 = vsel %vm212, %v200, 0
  %216 = vmatprep.subr.mxu0 0.0
  %217 = vmatpush1.msra.mxu0 %v201
  %218 = vmatprep.subr.mxu0 0.0
  %219 = vmatpush1.msra.mxu0 %v202
  %220 = vmatprep.subr.mxu0 0.0
  %221 = vmatpush1.msra.mxu0 %v203
  %222 = vmatprep.subr.mxu0 0.0
  %223 = vmatpush1.msra.mxu0 %v204
  %224 = vmatprep.subr.mxu0 0.0
  %225 = vmatpush1.msra.mxu0 0.0
  %226 = vmatprep.subr.mxu0 0.0
  %227 = vmatpush1.msra.mxu0 0.0
  %228 = vmatprep.subr.mxu0 0.0
  %229 = vmatpush1.msra.mxu0 0.0
  %230 = vmatprep.subr.mxu0 0.0
  %231 = vmatpush1.msra.mxu0 0.0
  %232 = vmatprep.subr.mxu0 0.0
  %233 = vmatpush1.msra.mxu0 0.0
  %234 = vmatprep.subr.mxu0 0.0
  %235 = vmatpush1.msra.mxu0 0.0
  %236 = vmatprep.subr.mxu0 0.0
  %237 = vmatpush1.msra.mxu0 0.0
  %238 = vmatprep.subr.mxu0 0.0
  %239 = vmatpush1.msra.mxu0 0.0
  %240 = vmatprep.subr.mxu0 0.0
  %241 = vmatpush1.msra.mxu0 0.0
  %242 = vmatprep.subr.mxu0 0.0
  %243 = vmatpush1.msra.mxu0 0.0
  %244 = vmatprep.subr.mxu0 0.0
  %245 = vmatpush1.msra.mxu0 0.0
  %246 = vmatprep.subr.mxu0 0.0
  %247 = vmatpush1.msra.mxu0 0.0
  %248 = vmatprep.subr.mxu0 0.0
  %249 = vmatpush1.msra.mxu0 0.0
  %250 = vmatprep.subr.mxu0 0.0
  %251 = vmatpush1.msra.mxu0 0.0
  %252 = vmatprep.subr.mxu0 0.0
  %253 = vmatpush1.msra.mxu0 0.0
  %254 = vmatprep.subr.mxu0 0.0
  %255 = vmatpush1.msra.mxu0 0.0
  %256 = vmatprep.subr.mxu0 0.0
  %257 = vmatpush1.msra.mxu0 0.0
  %258 = vmatprep.subr.mxu0 0.0
  %259 = vmatpush1.msra.mxu0 0.0
  %260 = vmatprep.subr.mxu0 0.0
  %261 = vmatpush1.msra.mxu0 0.0
  %262 = vmatprep.subr.mxu0 0.0
  %263 = vmatpush1.msra.mxu0 0.0
  %264 = vmatprep.subr.mxu0 0.0
  %265 = vmatpush1.msra.mxu0 0.0
  %266 = vmatprep.subr.mxu0 0.0
  %267 = vmatpush1.msra.mxu0 0.0
  %268 = vmatprep.subr.mxu0 0.0
  %269 = vmatpush1.msra.mxu0 0.0
  %270 = vmatprep.subr.mxu0 0.0
  %271 = vmatpush1.msra.mxu0 0.0
  %272 = vmatprep.subr.mxu0 0.0
  %273 = vmatpush1.msra.mxu0 0.0
  %274 = vmatprep.subr.mxu0 0.0
  %275 = vmatpush1.msra.mxu0 0.0
  %276 = vmatprep.subr.mxu0 0.0
  %277 = vmatpush1.msra.mxu0 0.0
  %278 = vmatprep.subr.mxu0 0.0
  %279 = vmatpush1.msra.mxu0 0.0
  %280 = vmatprep.mubr.f32.mxu0 0.0
  %281 = vmatmul.mubr.f32.gmra.mrb[0].mxu0 %v214
  %v282 = vpop.f32.mrb[0].mxu0
  %v283 = vadd.f32 %v210, %v282
  %v284 = vpop.f32.mrb[0].mxu0
  %285 = vdwg.mxu0
  %v286 = vlaneseq
  %v287 = vand.u32 %v286, 127
  %vm288 = vcmp.eq.s32.totalorder %v287, 0
  %v289 = vxor.u32 %v283, 2147483648
  %v290 = vmul.f32 %v289, 1.442695
  %v291 = vpow.pop %v290
  %v292 = vadd.f32 %v291, 1.0
  %v293 = vrcp.pop %v292
  %v294 = vmul.f32 1.0, %v293
  %v295 = vmul.f32 %v294, 0.25
  %v296 = vtanh.pop %v283
  %v297 = vmul.f32 %v296, 0.5
  %v298 = vsel %vm288, %v295, %v297
  %299 = vst [vmem:[%s7] sm:$0xff] %v298
  // Predicated region
  $region30: #{actor_forward.1} parent=0 // pred_check
    _
  $region31: #{actor_forward.1} parent=0 // pred_check_branch
    %301 = sbr.rel (0) target = $region33
  $region32: #{actor_forward.1} parent=0 // pred_region
    _
  $region33: #{actor_forward.1} parent=0 // pred_fallthru
    _
  // Predicated region
  $region34: #{actor_forward.1} parent=0 // pred_check
    _
  $region35: #{actor_forward.1} parent=0 // pred_check_branch
    %303 = sbr.rel (0) target = $region37
  $region36: #{actor_forward.1} parent=0 // pred_region
    _
  $region37: #{actor_forward.1} parent=0 // pred_fallthru
    _

</llo_original>
